<compile_context>
chip_gen: v7x
topology: tpu7x:2x2x1
jax: 0.10.0
libtpu: 0.0.40
codegen_flags: <defaults>
</compile_context>

<pallas_src>
import functools

import jax
import jax.numpy as jnp
from jax.experimental import pallas as pl
from jax.experimental.pallas import tpu as pltpu

# pi tower: input -> 128 -> 64 -> 32 -> 16 -> 8 -> 4 -> 2 -> n_actions
# v  tower: input -> 128 -> 64 -> 32 -> 16 -> 8 -> 4 -> 2 -> 1
HIDDEN = [128, 64, 32, 16, 8, 4, 2]
N_LAYERS = 8     # 7 hidden (ReLU) + 1 output (no activation)
V_OFF0 = 128     # v-tower lane offset in the 256-lane layer-0 output
V_OFF1 = 64      # v-tower lane offset in the 128-lane layers 1..7 output


def _round_up(n, m):
    return ((n + m - 1) // m) * m


def _fused_kernel(x_ref, w0_ref, b0_ref, w1_ref, wr_ref, br_ref, out_ref):
    """x (TB, in_pad) bf16 | W0 (in_pad,256) bf16 | b0 (1,256) f32 |
       W1 (256,128) bf16 | Wr (6,128,128) bf16 | br (7,1,128) f32 |
       out (TB, 128) f32."""
    # Layer 0: (TB, in_pad) @ (in_pad, 256) -> pi lanes [0:128), v [128:256)
    h = jnp.dot(x_ref[...], w0_ref[...], preferred_element_type=jnp.float32)
    h = jnp.maximum(h + b0_ref[...], 0.0)
    # Layer 1: (TB, 256) @ (256, 128) -> pi lanes [0:64), v [64:128)
    h = jnp.dot(h.astype(jnp.bfloat16), w1_ref[...],
                preferred_element_type=jnp.float32)
    h = jnp.maximum(h + br_ref[0], 0.0)
    # Layers 2..7: (TB, 128) @ (128, 128); last layer has no ReLU.
    for i in range(N_LAYERS - 2):
        h = jnp.dot(h.astype(jnp.bfloat16), wr_ref[i],
                    preferred_element_type=jnp.float32) + br_ref[i + 1]
        if i < N_LAYERS - 3:
            h = jnp.maximum(h, 0.0)
    out_ref[...] = h


@functools.partial(jax.jit, static_argnames=("n_actions",))
def actor_critic_forward(x, w0, b0, w1, wr, br, *, n_actions):
    """Returns (pi, v) with shapes (B, n_actions) and (B, 1)."""
    B, input_dim = x.shape
    in_pad = w0.shape[0]
    out_w = wr.shape[-1]            # 128

    # Batch tiling: tb=128 for large batches (>=2 grid steps when B>128 so
    # both v7x TCs are used); tiny batches get one 16-row-aligned tile.
    tb = 128 if B >= 128 else _round_up(B, 16)
    b_pad = _round_up(B, tb)

    # Zero-pad rows/lanes; padded lanes hit zero weight rows so results exact.
    x_pad = jnp.zeros((b_pad, in_pad), jnp.bfloat16)
    x_pad = x_pad.at[:B, :input_dim].set(x.astype(jnp.bfloat16))

    out = pl.pallas_call(
        _fused_kernel,
        out_shape=jax.ShapeDtypeStruct((b_pad, out_w), jnp.float32),
        grid=(b_pad // tb,),
        in_specs=[
            pl.BlockSpec((tb, in_pad), lambda i: (i, 0)),       # x rows
            pl.BlockSpec(w0.shape, lambda i: (0, 0)),           # resident W0
            pl.BlockSpec(b0.shape, lambda i: (0, 0)),           # resident b0
            pl.BlockSpec(w1.shape, lambda i: (0, 0)),           # resident W1
            pl.BlockSpec(wr.shape, lambda i: (0, 0, 0)),        # resident Wr
            pl.BlockSpec(br.shape, lambda i: (0, 0, 0)),        # resident br
        ],
        out_specs=pl.BlockSpec((tb, out_w), lambda i: (i, 0)),
        compiler_params=pltpu.CompilerParams(
            dimension_semantics=("parallel",)),
    )(x_pad, w0, b0, w1, wr, br)

    pi = out[:B, :n_actions]
    v = out[:B, V_OFF1:V_OFF1 + 1]
    return pi, v


def pack_params(pi_params, v_params, input_dim, n_actions):
    """Pack both towers into split, block-diagonal bf16 slabs.

    Per-layer weights are stored (in, out), i.e. transposed vs. PyTorch, so
    the kernel computes y = x @ W + b (== PyTorch's x @ W.T + b).
    """
    assert n_actions <= V_OFF1
    pi_dims = [input_dim] + HIDDEN + [n_actions]
    v_dims = [input_dim] + HIDDEN + [1]
    in_pad = _round_up(input_dim, 128)

    w0 = jnp.zeros((in_pad, 2 * V_OFF0), jnp.float32)                    # (in_pad,256)
    b0 = jnp.zeros((1, 2 * V_OFF0), jnp.float32)                         # (1,256)
    w1 = jnp.zeros((2 * V_OFF0, 2 * V_OFF1), jnp.float32)                # (256,128)
    wr = jnp.zeros((N_LAYERS - 2, 2 * V_OFF1, 2 * V_OFF1), jnp.float32)  # (6,128,128)
    br = jnp.zeros((N_LAYERS - 1, 1, 2 * V_OFF1), jnp.float32)           # (7,1,128)

    # Layer 0: both towers read the same input lanes; outputs side by side.
    (wp, bp), (wv, bv) = pi_params[0], v_params[0]
    w0 = w0.at[:input_dim, :128].set(wp)
    w0 = w0.at[:input_dim, V_OFF0:V_OFF0 + 128].set(wv)
    b0 = b0.at[0, :128].set(bp)
    b0 = b0.at[0, V_OFF0:V_OFF0 + 128].set(bv)

    # Layer 1: inputs at pi[0:128)/v[128:256); outputs re-packed to 128 lanes.
    (wp, bp), (wv, bv) = pi_params[1], v_params[1]
    w1 = w1.at[:128, :64].set(wp)
    w1 = w1.at[V_OFF0:V_OFF0 + 128, V_OFF1:V_OFF1 + 64].set(wv)
    br = br.at[0, 0, :64].set(bp)
    br = br.at[0, 0, V_OFF1:V_OFF1 + 64].set(bv)

    # Layers 2..7: block-diagonal inside 128 lanes (pi [0:64), v [64:128)).
    for i in range(2, N_LAYERS):
        (wp, bp), (wv, bv) = pi_params[i], v_params[i]
        pin, pout = pi_dims[i], pi_dims[i + 1]
        vin, vout = v_dims[i], v_dims[i + 1]
        wr = wr.at[i - 2, :pin, :pout].set(wp)
        wr = wr.at[i - 2, V_OFF1:V_OFF1 + vin, V_OFF1:V_OFF1 + vout].set(wv)
        br = br.at[i - 1, 0, :pout].set(bp)
        br = br.at[i - 1, 0, V_OFF1:V_OFF1 + vout].set(bv)

    return (w0.astype(jnp.bfloat16), b0, w1.astype(jnp.bfloat16),
            wr.astype(jnp.bfloat16), br)


def init_params(key, input_dim, n_actions):
    """Deterministic init mimicking nn.Linear default U[-1/sqrt(in), 1/sqrt(in)].

    Weights are stored (in, out) — transposed relative to PyTorch."""
    pi_dims = [input_dim] + HIDDEN + [n_actions]
    v_dims = [input_dim] + HIDDEN + [1]

    def make_tower(key, dims):
        params = []
        for i in range(len(dims) - 1):
            fan_in, fan_out = dims[i], dims[i + 1]
            key, kw, kb = jax.random.split(key, 3)
            bound = 1.0 / (fan_in ** 0.5)
            w = jax.random.uniform(kw, (fan_in, fan_out), jnp.float32,
                                   minval=-bound, maxval=bound)
            b = jax.random.uniform(kb, (fan_out,), jnp.float32,
                                   minval=-bound, maxval=bound)
            params.append((w, b))
        return key, params

    key, pi_params = make_tower(key, pi_dims)
    key, v_params = make_tower(key, v_dims)
    return tuple(pi_params), tuple(v_params)


def reference_forward(x, pi_params, v_params):
    """Pure-JAX f32 reference of the PyTorch forward."""
    def tower(params, h):
        for i, (w, b) in enumerate(params):
            h = h @ w + b
            if i < len(params) - 1:
                h = jnp.maximum(h, 0.0)
        return h
    return tower(pi_params, x), tower(v_params, x)


def reference_forward_bf16(x, pi_params, v_params):
    """Pure-JAX reference matching the kernel's bf16-operand / f32-acc math."""
    def tower(params, h):
        for i, (w, b) in enumerate(params):
            h = jnp.dot(h.astype(jnp.bfloat16), w.astype(jnp.bfloat16),
                        preferred_element_type=jnp.float32) + b
            if i < len(params) - 1:
                h = jnp.maximum(h, 0.0)
        return h
    return tower(pi_params, x), tower(v_params, x)


# TODO(synk): remember/calc_returns/calc_loss/choose_action (Categorical
# sampling, reward bookkeeping) are host-side training utilities, not part of
# the forward pass, so they are intentionally not lowered to Pallas.

if __name__ == "__main__":
    INPUT_DIM = 32
    N_ACTIONS = 4
    BATCH = 2

    key = jax.random.PRNGKey(0)
    key, kx = jax.random.split(key)
    x = jax.random.normal(kx, (BATCH, INPUT_DIM), jnp.float32)

    pi_params, v_params = init_params(key, INPUT_DIM, N_ACTIONS)
    w0, b0, w1, wr, br = pack_params(pi_params, v_params, INPUT_DIM, N_ACTIONS)

    pi_out, v_out = actor_critic_forward(x, w0, b0, w1, wr, br,
                                         n_actions=N_ACTIONS)
    jax.block_until_ready((pi_out, v_out))

    assert pi_out.shape == (BATCH, N_ACTIONS)
    assert v_out.shape == (BATCH, 1)

    # Correctness: kernel vs. arithmetic-matched (bf16-operand) reference.
    pi_m, v_m = reference_forward_bf16(x, pi_params, v_params)
    assert jnp.allclose(pi_out, pi_m, atol=1e-3, rtol=1e-3)
    assert jnp.allclose(v_out, v_m, atol=1e-3, rtol=1e-3)

    # Sanity: bf16 operands stay close to the full-f32 forward.
    pi_ref, v_ref = reference_forward(x, pi_params, v_params)
    assert jnp.allclose(pi_out, pi_ref, atol=1e-1, rtol=1e-1)
    assert jnp.allclose(v_out, v_ref, atol=1e-1, rtol=1e-1)

    print("KERNEL_OK")
</pallas_src>

<mosaic_0001>
module attributes {stable_mosaic.version = 11 : i64} {
  func.func @_fused_kernel(%arg0: i32, %arg1: memref<16x128xbf16, #tpu.memory_space<vmem>>, %arg2: memref<128x256xbf16, #tpu.memory_space<vmem>>, %arg3: memref<1x256xf32, #tpu.memory_space<vmem>>, %arg4: memref<256x128xbf16, #tpu.memory_space<vmem>>, %arg5: memref<6x128x128xbf16, #tpu.memory_space<vmem>>, %arg6: memref<7x1x128xf32, #tpu.memory_space<vmem>>, %arg7: memref<16x128xf32, #tpu.memory_space<vmem>>) attributes {dimension_semantics = [#tpu.dimension_semantics<parallel>], iteration_bounds = array<i64: 1>, scalar_prefetch = 0 : i64, scratch_operands = 0 : i64, tpu.core_type = #tpu.core_type<tc>, window_params = [{transform_indices = @transform_0, window_bounds = array<i64: 16, 128>}, {pipeline_mode = #tpu.pipeline_mode<synchronous>, transform_indices = @transform_1, window_bounds = array<i64: 128, 256>}, {pipeline_mode = #tpu.pipeline_mode<synchronous>, transform_indices = @transform_2, window_bounds = array<i64: 1, 256>}, {pipeline_mode = #tpu.pipeline_mode<synchronous>, transform_indices = @transform_3, window_bounds = array<i64: 256, 128>}, {pipeline_mode = #tpu.pipeline_mode<synchronous>, transform_indices = @transform_4, window_bounds = array<i64: 6, 128, 128>}, {pipeline_mode = #tpu.pipeline_mode<synchronous>, transform_indices = @transform_5, window_bounds = array<i64: 7, 1, 128>}, {transform_indices = @transform_6, window_bounds = array<i64: 16, 128>}]} {
    %c0 = arith.constant 0 : index
    %c0_0 = arith.constant 0 : index
    %0 = vector.load %arg1[%c0, %c0_0] : memref<16x128xbf16, #tpu.memory_space<vmem>>, vector<16x128xbf16>
    %c0_1 = arith.constant 0 : index
    %c0_2 = arith.constant 0 : index
    %1 = vector.load %arg2[%c0_1, %c0_2] : memref<128x256xbf16, #tpu.memory_space<vmem>>, vector<128x256xbf16>
    %cst = arith.constant dense<0.000000e+00> : vector<16x256xf32>
    %2 = tpu.matmul %0, %1, %cst {dimension_numbers = #tpu.dot_dimension_numbers<[1], [0], [0], [1], [0, 0, 1, 1], [], []>} : vector<16x128xbf16>, vector<128x256xbf16>, vector<16x256xf32> -> vector<16x256xf32>
    %c0_3 = arith.constant 0 : index
    %c0_4 = arith.constant 0 : index
    %3 = vector.load %arg3[%c0_3, %c0_4] : memref<1x256xf32, #tpu.memory_space<vmem>>, vector<1x256xf32>
    %4 = vector.broadcast %3 : vector<1x256xf32> to vector<16x256xf32>
    %5 = arith.addf %2, %4 : vector<16x256xf32>
    %cst_5 = arith.constant 0.000000e+00 : f32
    %6 = vector.broadcast %cst_5 : f32 to vector<16x256xf32>
    %7 = arith.maximumf %5, %6 : vector<16x256xf32>
    %8 = arith.truncf %7 : vector<16x256xf32> to vector<16x256xbf16>
    %c0_6 = arith.constant 0 : index
    %c0_7 = arith.constant 0 : index
    %9 = vector.load %arg4[%c0_6, %c0_7] : memref<256x128xbf16, #tpu.memory_space<vmem>>, vector<256x128xbf16>
    %cst_8 = arith.constant dense<0.000000e+00> : vector<16x128xf32>
    %10 = tpu.matmul %8, %9, %cst_8 {dimension_numbers = #tpu.dot_dimension_numbers<[1], [0], [0], [1], [0, 0, 1, 1], [], []>} : vector<16x256xbf16>, vector<256x128xbf16>, vector<16x128xf32> -> vector<16x128xf32>
    %c0_9 = arith.constant 0 : index
    %c0_10 = arith.constant 0 : index
    %c0_11 = arith.constant 0 : index
    %11 = vector.load %arg6[%c0_9, %c0_10, %c0_11] : memref<7x1x128xf32, #tpu.memory_space<vmem>>, vector<1x1x128xf32>
    %12 = vector.shape_cast %11 : vector<1x1x128xf32> to vector<1x128xf32>
    %13 = vector.broadcast %12 : vector<1x128xf32> to vector<16x128xf32>
    %14 = arith.addf %10, %13 : vector<16x128xf32>
    %cst_12 = arith.constant 0.000000e+00 : f32
    %15 = vector.broadcast %cst_12 : f32 to vector<16x128xf32>
    %16 = arith.maximumf %14, %15 : vector<16x128xf32>
    %17 = arith.truncf %16 : vector<16x128xf32> to vector<16x128xbf16>
    %c0_13 = arith.constant 0 : index
    %c0_14 = arith.constant 0 : index
    %c0_15 = arith.constant 0 : index
    %18 = vector.load %arg5[%c0_13, %c0_14, %c0_15] : memref<6x128x128xbf16, #tpu.memory_space<vmem>>, vector<1x128x128xbf16>
    %19 = vector.shape_cast %18 : vector<1x128x128xbf16> to vector<128x128xbf16>
    %cst_16 = arith.constant dense<0.000000e+00> : vector<16x128xf32>
    %20 = tpu.matmul %17, %19, %cst_16 {dimension_numbers = #tpu.dot_dimension_numbers<[1], [0], [0], [1], [0, 0, 1, 1], [], []>} : vector<16x128xbf16>, vector<128x128xbf16>, vector<16x128xf32> -> vector<16x128xf32>
    %c1 = arith.constant 1 : index
    %c0_17 = arith.constant 0 : index
    %c0_18 = arith.constant 0 : index
    %21 = vector.load %arg6[%c1, %c0_17, %c0_18] : memref<7x1x128xf32, #tpu.memory_space<vmem>>, vector<1x1x128xf32>
    %22 = vector.shape_cast %21 : vector<1x1x128xf32> to vector<1x128xf32>
    %23 = vector.broadcast %22 : vector<1x128xf32> to vector<16x128xf32>
    %24 = arith.addf %20, %23 : vector<16x128xf32>
    %cst_19 = arith.constant 0.000000e+00 : f32
    %25 = vector.broadcast %cst_19 : f32 to vector<16x128xf32>
    %26 = arith.maximumf %24, %25 : vector<16x128xf32>
    %27 = arith.truncf %26 : vector<16x128xf32> to vector<16x128xbf16>
    %c1_20 = arith.constant 1 : index
    %c0_21 = arith.constant 0 : index
    %c0_22 = arith.constant 0 : index
    %28 = vector.load %arg5[%c1_20, %c0_21, %c0_22] : memref<6x128x128xbf16, #tpu.memory_space<vmem>>, vector<1x128x128xbf16>
    %29 = vector.shape_cast %28 : vector<1x128x128xbf16> to vector<128x128xbf16>
    %cst_23 = arith.constant dense<0.000000e+00> : vector<16x128xf32>
    %30 = tpu.matmul %27, %29, %cst_23 {dimension_numbers = #tpu.dot_dimension_numbers<[1], [0], [0], [1], [0, 0, 1, 1], [], []>} : vector<16x128xbf16>, vector<128x128xbf16>, vector<16x128xf32> -> vector<16x128xf32>
    %c2 = arith.constant 2 : index
    %c0_24 = arith.constant 0 : index
    %c0_25 = arith.constant 0 : index
    %31 = vector.load %arg6[%c2, %c0_24, %c0_25] : memref<7x1x128xf32, #tpu.memory_space<vmem>>, vector<1x1x128xf32>
    %32 = vector.shape_cast %31 : vector<1x1x128xf32> to vector<1x128xf32>
    %33 = vector.broadcast %32 : vector<1x128xf32> to vector<16x128xf32>
    %34 = arith.addf %30, %33 : vector<16x128xf32>
    %cst_26 = arith.constant 0.000000e+00 : f32
    %35 = vector.broadcast %cst_26 : f32 to vector<16x128xf32>
    %36 = arith.maximumf %34, %35 : vector<16x128xf32>
    %37 = arith.truncf %36 : vector<16x128xf32> to vector<16x128xbf16>
    %c2_27 = arith.constant 2 : index
    %c0_28 = arith.constant 0 : index
    %c0_29 = arith.constant 0 : index
    %38 = vector.load %arg5[%c2_27, %c0_28, %c0_29] : memref<6x128x128xbf16, #tpu.memory_space<vmem>>, vector<1x128x128xbf16>
    %39 = vector.shape_cast %38 : vector<1x128x128xbf16> to vector<128x128xbf16>
    %cst_30 = arith.constant dense<0.000000e+00> : vector<16x128xf32>
    %40 = tpu.matmul %37, %39, %cst_30 {dimension_numbers = #tpu.dot_dimension_numbers<[1], [0], [0], [1], [0, 0, 1, 1], [], []>} : vector<16x128xbf16>, vector<128x128xbf16>, vector<16x128xf32> -> vector<16x128xf32>
    %c3 = arith.constant 3 : index
    %c0_31 = arith.constant 0 : index
    %c0_32 = arith.constant 0 : index
    %41 = vector.load %arg6[%c3, %c0_31, %c0_32] : memref<7x1x128xf32, #tpu.memory_space<vmem>>, vector<1x1x128xf32>
    %42 = vector.shape_cast %41 : vector<1x1x128xf32> to vector<1x128xf32>
    %43 = vector.broadcast %42 : vector<1x128xf32> to vector<16x128xf32>
    %44 = arith.addf %40, %43 : vector<16x128xf32>
    %cst_33 = arith.constant 0.000000e+00 : f32
    %45 = vector.broadcast %cst_33 : f32 to vector<16x128xf32>
    %46 = arith.maximumf %44, %45 : vector<16x128xf32>
    %47 = arith.truncf %46 : vector<16x128xf32> to vector<16x128xbf16>
    %c3_34 = arith.constant 3 : index
    %c0_35 = arith.constant 0 : index
    %c0_36 = arith.constant 0 : index
    %48 = vector.load %arg5[%c3_34, %c0_35, %c0_36] : memref<6x128x128xbf16, #tpu.memory_space<vmem>>, vector<1x128x128xbf16>
    %49 = vector.shape_cast %48 : vector<1x128x128xbf16> to vector<128x128xbf16>
    %cst_37 = arith.constant dense<0.000000e+00> : vector<16x128xf32>
    %50 = tpu.matmul %47, %49, %cst_37 {dimension_numbers = #tpu.dot_dimension_numbers<[1], [0], [0], [1], [0, 0, 1, 1], [], []>} : vector<16x128xbf16>, vector<128x128xbf16>, vector<16x128xf32> -> vector<16x128xf32>
    %c4 = arith.constant 4 : index
    %c0_38 = arith.constant 0 : index
    %c0_39 = arith.constant 0 : index
    %51 = vector.load %arg6[%c4, %c0_38, %c0_39] : memref<7x1x128xf32, #tpu.memory_space<vmem>>, vector<1x1x128xf32>
    %52 = vector.shape_cast %51 : vector<1x1x128xf32> to vector<1x128xf32>
    %53 = vector.broadcast %52 : vector<1x128xf32> to vector<16x128xf32>
    %54 = arith.addf %50, %53 : vector<16x128xf32>
    %cst_40 = arith.constant 0.000000e+00 : f32
    %55 = vector.broadcast %cst_40 : f32 to vector<16x128xf32>
    %56 = arith.maximumf %54, %55 : vector<16x128xf32>
    %57 = arith.truncf %56 : vector<16x128xf32> to vector<16x128xbf16>
    %c4_41 = arith.constant 4 : index
    %c0_42 = arith.constant 0 : index
    %c0_43 = arith.constant 0 : index
    %58 = vector.load %arg5[%c4_41, %c0_42, %c0_43] : memref<6x128x128xbf16, #tpu.memory_space<vmem>>, vector<1x128x128xbf16>
    %59 = vector.shape_cast %58 : vector<1x128x128xbf16> to vector<128x128xbf16>
    %cst_44 = arith.constant dense<0.000000e+00> : vector<16x128xf32>
    %60 = tpu.matmul %57, %59, %cst_44 {dimension_numbers = #tpu.dot_dimension_numbers<[1], [0], [0], [1], [0, 0, 1, 1], [], []>} : vector<16x128xbf16>, vector<128x128xbf16>, vector<16x128xf32> -> vector<16x128xf32>
    %c5 = arith.constant 5 : index
    %c0_45 = arith.constant 0 : index
    %c0_46 = arith.constant 0 : index
    %61 = vector.load %arg6[%c5, %c0_45, %c0_46] : memref<7x1x128xf32, #tpu.memory_space<vmem>>, vector<1x1x128xf32>
    %62 = vector.shape_cast %61 : vector<1x1x128xf32> to vector<1x128xf32>
    %63 = vector.broadcast %62 : vector<1x128xf32> to vector<16x128xf32>
    %64 = arith.addf %60, %63 : vector<16x128xf32>
    %cst_47 = arith.constant 0.000000e+00 : f32
    %65 = vector.broadcast %cst_47 : f32 to vector<16x128xf32>
    %66 = arith.maximumf %64, %65 : vector<16x128xf32>
    %67 = arith.truncf %66 : vector<16x128xf32> to vector<16x128xbf16>
    %c5_48 = arith.constant 5 : index
    %c0_49 = arith.constant 0 : index
    %c0_50 = arith.constant 0 : index
    %68 = vector.load %arg5[%c5_48, %c0_49, %c0_50] : memref<6x128x128xbf16, #tpu.memory_space<vmem>>, vector<1x128x128xbf16>
    %69 = vector.shape_cast %68 : vector<1x128x128xbf16> to vector<128x128xbf16>
    %cst_51 = arith.constant dense<0.000000e+00> : vector<16x128xf32>
    %70 = tpu.matmul %67, %69, %cst_51 {dimension_numbers = #tpu.dot_dimension_numbers<[1], [0], [0], [1], [0, 0, 1, 1], [], []>} : vector<16x128xbf16>, vector<128x128xbf16>, vector<16x128xf32> -> vector<16x128xf32>
    %c6 = arith.constant 6 : index
    %c0_52 = arith.constant 0 : index
    %c0_53 = arith.constant 0 : index
    %71 = vector.load %arg6[%c6, %c0_52, %c0_53] : memref<7x1x128xf32, #tpu.memory_space<vmem>>, vector<1x1x128xf32>
    %72 = vector.shape_cast %71 : vector<1x1x128xf32> to vector<1x128xf32>
    %73 = vector.broadcast %72 : vector<1x128xf32> to vector<16x128xf32>
    %74 = arith.addf %70, %73 : vector<16x128xf32>
    %c0_54 = arith.constant 0 : index
    %c0_55 = arith.constant 0 : index
    %75 = vector.load %arg7[%c0_54, %c0_55] : memref<16x128xf32, #tpu.memory_space<vmem>>, vector<16x128xf32>
    tpu.vector_store %arg7[%c0_54, %c0_55], %74 {strides = array<i32>} : memref<16x128xf32, #tpu.memory_space<vmem>>, vector<16x128xf32>,
    return
  }
  func.func @transform_0(%arg0: i32) -> (i32, i32) {
    %c0_i32 = arith.constant 0 : i32
    %c0_i32_0 = arith.constant 0 : i32
    return %arg0, %c0_i32 : i32, i32
  }
  func.func @transform_1(%arg0: i32) -> (i32, i32) {
    %c0_i32 = arith.constant 0 : i32
    %c0_i32_0 = arith.constant 0 : i32
    %c0_i32_1 = arith.constant 0 : i32
    return %c0_i32, %c0_i32_0 : i32, i32
  }
  func.func @transform_2(%arg0: i32) -> (i32, i32) {
    %c0_i32 = arith.constant 0 : i32
    %c0_i32_0 = arith.constant 0 : i32
    %c0_i32_1 = arith.constant 0 : i32
    return %c0_i32, %c0_i32_0 : i32, i32
  }
  func.func @transform_3(%arg0: i32) -> (i32, i32) {
    %c0_i32 = arith.constant 0 : i32
    %c0_i32_0 = arith.constant 0 : i32
    %c0_i32_1 = arith.constant 0 : i32
    return %c0_i32, %c0_i32_0 : i32, i32
  }
  func.func @transform_4(%arg0: i32) -> (i32, i32, i32) {
    %c0_i32 = arith.constant 0 : i32
    %c0_i32_0 = arith.constant 0 : i32
    %c0_i32_1 = arith.constant 0 : i32
    %c0_i32_2 = arith.constant 0 : i32
    return %c0_i32, %c0_i32_0, %c0_i32_1 : i32, i32, i32
  }
  func.func @transform_5(%arg0: i32) -> (i32, i32, i32) {
    %c0_i32 = arith.constant 0 : i32
    %c0_i32_0 = arith.constant 0 : i32
    %c0_i32_1 = arith.constant 0 : i32
    %c0_i32_2 = arith.constant 0 : i32
    return %c0_i32, %c0_i32_0, %c0_i32_1 : i32, i32, i32
  }
  func.func @transform_6(%arg0: i32) -> (i32, i32) {
    %c0_i32 = arith.constant 0 : i32
    %c0_i32_0 = arith.constant 0 : i32
    return %arg0, %c0_i32 : i32, i32
  }
}

</mosaic_0001>

<llo_original>
// kernel: actor_critic_forward.1
$region0: #{actor_critic_forward.1}
  #allocation0 [shape = 'u32[]', space=smem, size = 0x4, offset = 0x4, fixed_abs, tag = 'smem constant byte address 0x4 - core index']
  #allocation1 [shape = 'u32[144,128]{1,0:T(1,128)}', space=vmem, size = 0x12000, scoped, tag = 'internal scratch']
  %s0 = inlined_call_operand.vmem [shape: bf16[16,128], index: 0, kind: input, shape index: {}]
  %s1 = inlined_call_operand.hbm [shape: bf16[128,256], index: 1, kind: input, shape index: {}]
  %s2 = inlined_call_operand.vmem [shape: f32[1,256], index: 2, kind: input, shape index: {}]
  %s3 = inlined_call_operand.hbm [shape: bf16[256,128], index: 3, kind: input, shape index: {}]
  %s4 = inlined_call_operand.hbm [shape: bf16[6,128,128], index: 4, kind: input, shape index: {}]
  %s5 = inlined_call_operand.vmem [shape: f32[7,1,128], index: 5, kind: input, shape index: {}]
  %s6 = inlined_call_operand.vmem [shape: f32[16,128], index: 6, kind: output, shape index: {}]
  %s7 = sld [smem:[#allocation0]]
  $region46: #{actor_critic_forward.1} parent=0
    _
  %s9 = ssub.s32 1, %s7
  %s10 = scalar_select 0, %s9, %s7
  $region1: #{actor_critic_forward.1} parent=0
    #allocation2 [shape = 'u8[65536]{0}', space=vmem, size = 0x10000, scoped, tag = 'input window, operand 1, single buffered']
    #allocation3 [shape = 's32[1]{0}', space=sflag, size = 0x4, scoped, tag = 'scoped memory for actor_critic_forward.1']
    #allocation4 [shape = 'u8[65536]{0}', space=vmem, size = 0x10000, scoped, tag = 'input window, operand 3, single buffered']
    #allocation5 [shape = 's32[1]{0}', space=sflag, size = 0x4, scoped, tag = 'scoped memory for actor_critic_forward.1']
    #allocation6 [shape = 'u8[196608]{0}', space=vmem, size = 0x30000, scoped, tag = 'input window, operand 4, single buffered']
    %11 = vsyncpa [#allocation3], 0
    %12 = vsyncpa [#allocation5], 0
    // Predicated region
    $region2: #{actor_critic_forward.1} parent=1 // pred_check
      _
    $region3: #{actor_critic_forward.1} parent=1 // pred_check_branch
      %14 = sbr.rel (0) target = $region5
    $region4: #{actor_critic_forward.1} parent=1 // pred_region
      _
    $region5: #{actor_critic_forward.1} parent=1 // pred_fallthru
      _
    // Predicated region
    $region6: #{actor_critic_forward.1} parent=1 // pred_check
      _
    $region7: #{actor_critic_forward.1} parent=1 // pred_check_branch
      %16 = sbr.rel (0) target = $region9
    $region8: #{actor_critic_forward.1} parent=1 // pred_region
      %s18 = ssub.s32 2048, 2048
      %19 = vsyncadd [#allocation3], %s18
      %s20 = sshll.u32 [#allocation2], 4
      %s21 = int_to_ptr.vmem [resolvable:$true] %s20
      %26 = dma.hbm_to_vmem [thread:$0]  %s1, 2048, %s21, [#allocation3], 128, 128, 8
    $region9: #{actor_critic_forward.1} parent=1 // pred_fallthru
      _
    // Predicated region
    $region10: #{actor_critic_forward.1} parent=1 // pred_check
      _
    $region11: #{actor_critic_forward.1} parent=1 // pred_check_branch
      %28 = sbr.rel (0) target = $region13
    $region12: #{actor_critic_forward.1} parent=1 // pred_region
      _
    $region13: #{actor_critic_forward.1} parent=1 // pred_fallthru
      _
    // Predicated region
    $region14: #{actor_critic_forward.1} parent=1 // pred_check
      _
    $region15: #{actor_critic_forward.1} parent=1 // pred_check_branch
      %30 = sbr.rel (0) target = $region17
    $region16: #{actor_critic_forward.1} parent=1 // pred_region
      %s32 = ssub.s32 2048, 2048
      %33 = vsyncadd [#allocation5], %s32
      %s34 = sshll.u32 [#allocation4], 4
      %s35 = int_to_ptr.vmem [resolvable:$true] %s34
      %40 = dma.hbm_to_vmem [thread:$0]  %s3, 2048, %s35, [#allocation5], 64, 64, 4
    $region17: #{actor_critic_forward.1} parent=1 // pred_fallthru
      _
    // Predicated region
    $region18: #{actor_critic_forward.1} parent=1 // pred_check
      _
    $region19: #{actor_critic_forward.1} parent=1 // pred_check_branch
      %42 = sbr.rel (0) target = $region21
    $region20: #{actor_critic_forward.1} parent=1 // pred_region
      %s44 = ssub.s32 6144, 6144
      %45 = vsyncadd [#allocation5], %s44
      %s46 = sshll.u32 [#allocation6], 4
      %s47 = int_to_ptr.vmem [resolvable:$true] %s46
      %52 = dma.hbm_to_vmem [thread:$0]  %s4, 6144, %s47, [#allocation5], 64, 64, 4
    $region21: #{actor_critic_forward.1} parent=1 // pred_fallthru
      _
    // Predicated region
    $region22: #{actor_critic_forward.1} parent=1 // pred_check
      _
    $region23: #{actor_critic_forward.1} parent=1 // pred_check_branch
      %54 = sbr.rel (0) target = $region25
    $region24: #{actor_critic_forward.1} parent=1 // pred_region
      _
    $region25: #{actor_critic_forward.1} parent=1 // pred_fallthru
      _
    // Predicated region
    $region26: #{actor_critic_forward.1} parent=1 // pred_check
      _
    $region27: #{actor_critic_forward.1} parent=1 // pred_check_branch
      %56 = sbr.rel (0) target = $region29
    $region28: #{actor_critic_forward.1} parent=1 // pred_region
      %57 = dma.done [#allocation3], 2048
    $region29: #{actor_critic_forward.1} parent=1 // pred_fallthru
      _
    // Predicated region
    $region30: #{actor_critic_forward.1} parent=1 // pred_check
      _
    $region31: #{actor_critic_forward.1} parent=1 // pred_check_branch
      %59 = sbr.rel (0) target = $region33
    $region32: #{actor_critic_forward.1} parent=1 // pred_region
      %60 = dma.done [#allocation5], 2048
    $region33: #{actor_critic_forward.1} parent=1 // pred_fallthru
      _
    // Predicated region
    $region34: #{actor_critic_forward.1} parent=1 // pred_check
      _
    $region35: #{actor_critic_forward.1} parent=1 // pred_check_branch
      %62 = sbr.rel (0) target = $region37
    $region36: #{actor_critic_forward.1} parent=1 // pred_region
      %63 = dma.done [#allocation5], 6144
    $region37: #{actor_critic_forward.1} parent=1 // pred_fallthru
      _
    %v65 = vld [vmem:[%s0] sm:$0xf]
    %v66 = vld [vmem:[%s0 + $0x4] sm:$0xf]
    %v67 = vld [vmem:[#allocation2] sm:$0xff]
    %v68 = vld [vmem:[#allocation2 + $0x8] sm:$0xff]
    %v69 = vld [vmem:[#allocation2 + $0x10] sm:$0xff]
    %v70 = vld [vmem:[#allocation2 + $0x18] sm:$0xff]
    %v71 = vld [vmem:[#allocation2 + $0x20] sm:$0xff]
    %v72 = vld [vmem:[#allocation2 + $0x28] sm:$0xff]
    %v73 = vld [vmem:[#allocation2 + $0x30] sm:$0xff]
    %v74 = vld [vmem:[#allocation2 + $0x38] sm:$0xff]
    %v75 = vld [vmem:[#allocation2 + $0x40] sm:$0xff]
    %v76 = vld [vmem:[#allocation2 + $0x48] sm:$0xff]
    %v77 = vld [vmem:[#allocation2 + $0x50] sm:$0xff]
    %v78 = vld [vmem:[#allocation2 + $0x58] sm:$0xff]
    %v79 = vld [vmem:[#allocation2 + $0x60] sm:$0xff]
    %v80 = vld [vmem:[#allocation2 + $0x68] sm:$0xff]
    %v81 = vld [vmem:[#allocation2 + $0x70] sm:$0xff]
    %v82 = vld [vmem:[#allocation2 + $0x78] sm:$0xff]
    %v83 = vld [vmem:[%s2] sm:$0x3]
    %v85 = vlaneseq
    %v86 = vshrl.u32 %v85, 7
    %v87 = vsub.s32 0, %v86
    %v88 = vrot.slane %v83, %v87
    %v89 = vlaneseq
    %v90 = vshrl.u32 %v89, 7
    %v91 = vsub.s32 1, %v90
    %v92 = vrot.slane %v83, %v91
    %v97 = vunpack.c.l.b16 %v65
    %v98 = vunpack.c.l.b16 %v66
    %v99 = vpack.c.b16 %v98, %v97
    %v117 = vunpack.c.l.b16 %v67
    %v118 = vunpack.c.h.b16 %v67
    %v119 = vunpack.c.l.b16 %v68
    %v120 = vunpack.c.h.b16 %v68
    %v121 = vunpack.c.l.b16 %v69
    %v122 = vunpack.c.h.b16 %v69
    %v123 = vunpack.c.l.b16 %v70
    %v124 = vunpack.c.h.b16 %v70
    %v125 = vunpack.c.l.b16 %v71
    %v126 = vunpack.c.h.b16 %v71
    %v127 = vunpack.c.l.b16 %v72
    %v128 = vunpack.c.h.b16 %v72
    %v129 = vunpack.c.l.b16 %v73
    %v130 = vunpack.c.h.b16 %v73
    %v131 = vunpack.c.l.b16 %v74
    %v132 = vunpack.c.h.b16 %v74
    %v133 = vunpack.c.l.b16 %v75
    %v134 = vunpack.c.h.b16 %v75
    %v135 = vunpack.c.l.b16 %v76
    %v136 = vunpack.c.h.b16 %v76
    %v137 = vunpack.c.l.b16 %v77
    %v138 = vunpack.c.h.b16 %v77
    %v139 = vunpack.c.l.b16 %v78
    %v140 = vunpack.c.h.b16 %v78
    %v141 = vunpack.c.l.b16 %v79
    %v142 = vunpack.c.h.b16 %v79
    %v143 = vunpack.c.l.b16 %v80
    %v144 = vunpack.c.h.b16 %v80
    %v145 = vunpack.c.l.b16 %v81
    %v146 = vunpack.c.h.b16 %v81
    %v147 = vunpack.c.l.b16 %v82
    %v148 = vunpack.c.h.b16 %v82
    %v149 = vpack.c.b16 %v119, %v117
    %v150 = vpack.c.b16 %v120, %v118
    %v151 = vpack.c.b16 %v123, %v121
    %v152 = vpack.c.b16 %v124, %v122
    %v153 = vpack.c.b16 %v127, %v125
    %v154 = vpack.c.b16 %v128, %v126
    %v155 = vpack.c.b16 %v131, %v129
    %v156 = vpack.c.b16 %v132, %v130
    %v157 = vpack.c.b16 %v135, %v133
    %v158 = vpack.c.b16 %v136, %v134
    %v159 = vpack.c.b16 %v139, %v137
    %v160 = vpack.c.b16 %v140, %v138
    %v161 = vpack.c.b16 %v143, %v141
    %v162 = vpack.c.b16 %v144, %v142
    %v163 = vpack.c.b16 %v147, %v145
    %v164 = vpack.c.b16 %v148, %v146
    %181 = vmatprep.subr.bf16.mxu0 %v150
    %182 = vmatpush1.bf16.msra.mxu0 %v149
    %183 = vmatprep.subr.bf16.mxu0 %v152
    %184 = vmatpush1.bf16.msra.mxu0 %v151
    %185 = vmatprep.subr.bf16.mxu0 %v154
    %186 = vmatpush1.bf16.msra.mxu0 %v153
    %187 = vmatprep.subr.bf16.mxu0 %v156
    %188 = vmatpush1.bf16.msra.mxu0 %v155
    %189 = vmatprep.subr.bf16.mxu0 %v158
    %190 = vmatpush1.bf16.msra.mxu0 %v157
    %191 = vmatprep.subr.bf16.mxu0 %v160
    %192 = vmatpush1.bf16.msra.mxu0 %v159
    %193 = vmatprep.subr.bf16.mxu0 %v162
    %194 = vmatpush1.bf16.msra.mxu0 %v161
    %195 = vmatprep.subr.bf16.mxu0 %v164
    %196 = vmatpush1.bf16.msra.mxu0 %v163
    %197 = vmatprep.subr.bf16.mxu0 0
    %198 = vmatpush1.bf16.msra.mxu0 0
    %199 = vmatprep.subr.bf16.mxu0 0
    %200 = vmatpush1.bf16.msra.mxu0 0
    %201 = vmatprep.subr.bf16.mxu0 0
    %202 = vmatpush1.bf16.msra.mxu0 0
    %203 = vmatprep.subr.bf16.mxu0 0
    %204 = vmatpush1.bf16.msra.mxu0 0
    %205 = vmatprep.subr.bf16.mxu0 0
    %206 = vmatpush1.bf16.msra.mxu0 0
    %207 = vmatprep.subr.bf16.mxu0 0
    %208 = vmatpush1.bf16.msra.mxu0 0
    %209 = vmatprep.subr.bf16.mxu0 0
    %210 = vmatpush1.bf16.msra.mxu0 0
    %211 = vmatprep.subr.bf16.mxu0 0
    %212 = vmatpush1.bf16.msra.mxu0 0
    %213 = vmatprep.mubr.bf16.mxu0 0
    %214 = vmatmul.mubr.bf16.gmra.mrb[0].mxu0 %v99
    %v215 = vpop.f32.mrb[0].mxu0
    %v216 = vadd.f32 %v88, %v215
    %v217 = vpop.f32.mrb[0].mxu0
    %v218 = vadd.f32 %v92, %v217
    %v219 = vpop.f32.mrb[0].mxu0
    %v220 = vadd.f32 %v88, %v219
    %v221 = vpop.f32.mrb[0].mxu0
    %v222 = vadd.f32 %v92, %v221
    %223 = vdwg.mxu0
    %v224 = vmax.f32 %v216, 0.0
    %v225 = vmax.f32 %v218, 0.0
    %v226 = vmax.f32 %v220, 0.0
    %v227 = vmax.f32 %v222, 0.0
    %v228 = vpack.c.bf16 %v226, %v224
    %v229 = vpack.c.bf16 %v227, %v225
    %v230 = vld [vmem:[#allocation4] sm:$0xf]
    %v231 = vld [vmem:[#allocation4 + $0x4] sm:$0xf]
    %v232 = vld [vmem:[#allocation4 + $0x8] sm:$0xf]
    %v233 = vld [vmem:[#allocation4 + $0xc] sm:$0xf]
    %v234 = vld [vmem:[#allocation4 + $0x10] sm:$0xf]
    %v235 = vld [vmem:[#allocation4 + $0x14] sm:$0xf]
    %v236 = vld [vmem:[#allocation4 + $0x18] sm:$0xf]
    %v237 = vld [vmem:[#allocation4 + $0x1c] sm:$0xf]
    %v238 = vld [vmem:[#allocation4 + $0x20] sm:$0xf]
    %v239 = vld [vmem:[#allocation4 + $0x24] sm:$0xf]
    %v240 = vld [vmem:[#allocation4 + $0x28] sm:$0xf]
    %v241 = vld [vmem:[#allocation4 + $0x2c] sm:$0xf]
    %v242 = vld [vmem:[#allocation4 + $0x30] sm:$0xf]
    %v243 = vld [vmem:[#allocation4 + $0x34] sm:$0xf]
    %v244 = vld [vmem:[#allocation4 + $0x38] sm:$0xf]
    %v245 = vld [vmem:[#allocation4 + $0x3c] sm:$0xf]
    %v246 = vld [vmem:[#allocation4 + $0x40] sm:$0xf]
    %v247 = vld [vmem:[#allocation4 + $0x44] sm:$0xf]
    %v248 = vld [vmem:[#allocation4 + $0x48] sm:$0xf]
    %v249 = vld [vmem:[#allocation4 + $0x4c] sm:$0xf]
    %v250 = vld [vmem:[#allocation4 + $0x50] sm:$0xf]
    %v251 = vld [vmem:[#allocation4 + $0x54] sm:$0xf]
    %v252 = vld [vmem:[#allocation4 + $0x58] sm:$0xf]
    %v253 = vld [vmem:[#allocation4 + $0x5c] sm:$0xf]
    %v254 = vld [vmem:[#allocation4 + $0x60] sm:$0xf]
    %v255 = vld [vmem:[#allocation4 + $0x64] sm:$0xf]
    %v256 = vld [vmem:[#allocation4 + $0x68] sm:$0xf]
    %v257 = vld [vmem:[#allocation4 + $0x6c] sm:$0xf]
    %v258 = vld [vmem:[#allocation4 + $0x70] sm:$0xf]
    %v259 = vld [vmem:[#allocation4 + $0x74] sm:$0xf]
    %v260 = vld [vmem:[#allocation4 + $0x78] sm:$0xf]
    %v261 = vld [vmem:[#allocation4 + $0x7c] sm:$0xf]
    %v262 = vld [vmem:[%s5] sm:$0x1]
    %v264 = vlaneseq
    %v265 = vshrl.u32 %v264, 7
    %v266 = vsub.s32 0, %v265
    %v267 = vrot.slane %v262, %v266
    %v301 = vunpack.c.l.b16 %v230
    %v302 = vunpack.c.l.b16 %v231
    %v303 = vunpack.c.l.b16 %v232
    %v304 = vunpack.c.l.b16 %v233
    %v305 = vunpack.c.l.b16 %v234
    %v306 = vunpack.c.l.b16 %v235
    %v307 = vunpack.c.l.b16 %v236
    %v308 = vunpack.c.l.b16 %v237
    %v309 = vunpack.c.l.b16 %v238
    %v310 = vunpack.c.l.b16 %v239
    %v311 = vunpack.c.l.b16 %v240
    %v312 = vunpack.c.l.b16 %v241
    %v313 = vunpack.c.l.b16 %v242
    %v314 = vunpack.c.l.b16 %v243
    %v315 = vunpack.c.l.b16 %v244
    %v316 = vunpack.c.l.b16 %v245
    %v317 = vunpack.c.l.b16 %v246
    %v318 = vunpack.c.l.b16 %v247
    %v319 = vunpack.c.l.b16 %v248
    %v320 = vunpack.c.l.b16 %v249
    %v321 = vunpack.c.l.b16 %v250
    %v322 = vunpack.c.l.b16 %v251
    %v323 = vunpack.c.l.b16 %v252
    %v324 = vunpack.c.l.b16 %v253
    %v325 = vunpack.c.l.b16 %v254
    %v326 = vunpack.c.l.b16 %v255
    %v327 = vunpack.c.l.b16 %v256
    %v328 = vunpack.c.l.b16 %v257
    %v329 = vunpack.c.l.b16 %v258
    %v330 = vunpack.c.l.b16 %v259
    %v331 = vunpack.c.l.b16 %v260
    %v332 = vunpack.c.l.b16 %v261
    %v333 = vpack.c.b16 %v302, %v301
    %v334 = vpack.c.b16 %v304, %v303
    %v335 = vpack.c.b16 %v306, %v305
    %v336 = vpack.c.b16 %v308, %v307
    %v337 = vpack.c.b16 %v310, %v309
    %v338 = vpack.c.b16 %v312, %v311
    %v339 = vpack.c.b16 %v314, %v313
    %v340 = vpack.c.b16 %v316, %v315
    %v341 = vpack.c.b16 %v318, %v317
    %v342 = vpack.c.b16 %v320, %v319
    %v343 = vpack.c.b16 %v322, %v321
    %v344 = vpack.c.b16 %v324, %v323
    %v345 = vpack.c.b16 %v326, %v325
    %v346 = vpack.c.b16 %v328, %v327
    %v347 = vpack.c.b16 %v330, %v329
    %v348 = vpack.c.b16 %v332, %v331
    %365 = vmatprep.subr.bf16.mxu0 0
    %366 = vmatpush1.bf16.msra.mxu0 %v333
    %367 = vmatprep.subr.bf16.mxu0 0
    %368 = vmatpush1.bf16.msra.mxu0 %v334
    %369 = vmatprep.subr.bf16.mxu0 0
    %370 = vmatpush1.bf16.msra.mxu0 %v335
    %371 = vmatprep.subr.bf16.mxu0 0
    %372 = vmatpush1.bf16.msra.mxu0 %v336
    %373 = vmatprep.subr.bf16.mxu0 0
    %374 = vmatpush1.bf16.msra.mxu0 %v337
    %375 = vmatprep.subr.bf16.mxu0 0
    %376 = vmatpush1.bf16.msra.mxu0 %v338
    %377 = vmatprep.subr.bf16.mxu0 0
    %378 = vmatpush1.bf16.msra.mxu0 %v339
    %379 = vmatprep.subr.bf16.mxu0 0
    %380 = vmatpush1.bf16.msra.mxu0 %v340
    %381 = vmatprep.subr.bf16.mxu0 0
    %382 = vmatpush1.bf16.msra.mxu0 %v341
    %383 = vmatprep.subr.bf16.mxu0 0
    %384 = vmatpush1.bf16.msra.mxu0 %v342
    %385 = vmatprep.subr.bf16.mxu0 0
    %386 = vmatpush1.bf16.msra.mxu0 %v343
    %387 = vmatprep.subr.bf16.mxu0 0
    %388 = vmatpush1.bf16.msra.mxu0 %v344
    %389 = vmatprep.subr.bf16.mxu0 0
    %390 = vmatpush1.bf16.msra.mxu0 %v345
    %391 = vmatprep.subr.bf16.mxu0 0
    %392 = vmatpush1.bf16.msra.mxu0 %v346
    %393 = vmatprep.subr.bf16.mxu0 0
    %394 = vmatpush1.bf16.msra.mxu0 %v347
    %395 = vmatprep.subr.bf16.mxu0 0
    %396 = vmatpush1.bf16.msra.mxu0 %v348
    %397 = vmatprep.mubr.bf16.mxu0 %v229
    %398 = vmatmul.mubr.bf16.gmra.mrb[0].mxu0 %v228
    %v399 = vpop.f32.mrb[0].mxu0
    %v400 = vadd.f32 %v267, %v399
    %v401 = vpop.f32.mrb[0].mxu0
    %v402 = vpop.f32.mrb[0].mxu0
    %v403 = vadd.f32 %v267, %v402
    %v404 = vpop.f32.mrb[0].mxu0
    %405 = vdwg.mxu0
    %v406 = vmax.f32 %v400, 0.0
    %v407 = vmax.f32 %v403, 0.0
    %v408 = vpack.c.bf16 %v407, %v406
    %v409 = vld [vmem:[#allocation6] sm:$0xf]
    %v410 = vld [vmem:[#allocation6 + $0x4] sm:$0xf]
    %v411 = vld [vmem:[#allocation6 + $0x8] sm:$0xf]
    %v412 = vld [vmem:[#allocation6 + $0xc] sm:$0xf]
    %v413 = vld [vmem:[#allocation6 + $0x10] sm:$0xf]
    %v414 = vld [vmem:[#allocation6 + $0x14] sm:$0xf]
    %v415 = vld [vmem:[#allocation6 + $0x18] sm:$0xf]
    %v416 = vld [vmem:[#allocation6 + $0x1c] sm:$0xf]
    %v417 = vld [vmem:[#allocation6 + $0x20] sm:$0xf]
    %v418 = vld [vmem:[#allocation6 + $0x24] sm:$0xf]
    %v419 = vld [vmem:[#allocation6 + $0x28] sm:$0xf]
    %v420 = vld [vmem:[#allocation6 + $0x2c] sm:$0xf]
    %v421 = vld [vmem:[#allocation6 + $0x30] sm:$0xf]
    %v422 = vld [vmem:[#allocation6 + $0x34] sm:$0xf]
    %v423 = vld [vmem:[#allocation6 + $0x38] sm:$0xf]
    %v424 = vld [vmem:[#allocation6 + $0x3c] sm:$0xf]
    %s425 = scalar_lea.vmem %s5, 1
    %v426 = vld [vmem:[%s425] sm:$0x1]
    %v428 = vlaneseq
    %v429 = vshrl.u32 %v428, 7
    %v430 = vsub.s32 0, %v429
    %v431 = vrot.slane %v426, %v430
    %v449 = vunpack.c.l.b16 %v409
    %v450 = vunpack.c.l.b16 %v410
    %v451 = vunpack.c.l.b16 %v411
    %v452 = vunpack.c.l.b16 %v412
    %v453 = vunpack.c.l.b16 %v413
    %v454 = vunpack.c.l.b16 %v414
    %v455 = vunpack.c.l.b16 %v415
    %v456 = vunpack.c.l.b16 %v416
    %v457 = vunpack.c.l.b16 %v417
    %v458 = vunpack.c.l.b16 %v418
    %v459 = vunpack.c.l.b16 %v419
    %v460 = vunpack.c.l.b16 %v420
    %v461 = vunpack.c.l.b16 %v421
    %v462 = vunpack.c.l.b16 %v422
    %v463 = vunpack.c.l.b16 %v423
    %v464 = vunpack.c.l.b16 %v424
    %v465 = vpack.c.b16 %v450, %v449
    %v466 = vpack.c.b16 %v452, %v451
    %v467 = vpack.c.b16 %v454, %v453
    %v468 = vpack.c.b16 %v456, %v455
    %v469 = vpack.c.b16 %v458, %v457
    %v470 = vpack.c.b16 %v460, %v459
    %v471 = vpack.c.b16 %v462, %v461
    %v472 = vpack.c.b16 %v464, %v463
    %481 = vmatprep.subr.bf16.mxu0 0
    %482 = vmatpush1.bf16.msra.mxu0 %v465
    %483 = vmatprep.subr.bf16.mxu0 0
    %484 = vmatpush1.bf16.msra.mxu0 %v466
    %485 = vmatprep.subr.bf16.mxu0 0
    %486 = vmatpush1.bf16.msra.mxu0 %v467
    %487 = vmatprep.subr.bf16.mxu0 0
    %488 = vmatpush1.bf16.msra.mxu0 %v468
    %489 = vmatprep.subr.bf16.mxu0 0
    %490 = vmatpush1.bf16.msra.mxu0 %v469
    %491 = vmatprep.subr.bf16.mxu0 0
    %492 = vmatpush1.bf16.msra.mxu0 %v470
    %493 = vmatprep.subr.bf16.mxu0 0
    %494 = vmatpush1.bf16.msra.mxu0 %v471
    %495 = vmatprep.subr.bf16.mxu0 0
    %496 = vmatpush1.bf16.msra.mxu0 %v472
    %497 = vmatprep.subr.bf16.mxu0 0
    %498 = vmatpush1.bf16.msra.mxu0 0
    %499 = vmatprep.subr.bf16.mxu0 0
    %500 = vmatpush1.bf16.msra.mxu0 0
    %501 = vmatprep.subr.bf16.mxu0 0
    %502 = vmatpush1.bf16.msra.mxu0 0
    %503 = vmatprep.subr.bf16.mxu0 0
    %504 = vmatpush1.bf16.msra.mxu0 0
    %505 = vmatprep.subr.bf16.mxu0 0
    %506 = vmatpush1.bf16.msra.mxu0 0
    %507 = vmatprep.subr.bf16.mxu0 0
    %508 = vmatpush1.bf16.msra.mxu0 0
    %509 = vmatprep.subr.bf16.mxu0 0
    %510 = vmatpush1.bf16.msra.mxu0 0
    %511 = vmatprep.subr.bf16.mxu0 0
    %512 = vmatpush1.bf16.msra.mxu0 0
    %513 = vmatprep.mubr.bf16.mxu0 0
    %514 = vmatmul.mubr.bf16.gmra.mrb[0].mxu0 %v408
    %v515 = vpop.f32.mrb[0].mxu0
    %v516 = vadd.f32 %v431, %v515
    %v517 = vpop.f32.mrb[0].mxu0
    %v518 = vpop.f32.mrb[0].mxu0
    %v519 = vadd.f32 %v431, %v518
    %v520 = vpop.f32.mrb[0].mxu0
    %521 = vdwg.mxu0
    %v522 = vmax.f32 %v516, 0.0
    %v523 = vmax.f32 %v519, 0.0
    %v524 = vpack.c.bf16 %v523, %v522
    %s525 = scalar_lea.vmem [#allocation6], 64
    %v526 = vld [vmem:[%s525] sm:$0xf]
    %v527 = vld [vmem:[%s525 + $0x4] sm:$0xf]
    %v528 = vld [vmem:[%s525 + $0x8] sm:$0xf]
    %v529 = vld [vmem:[%s525 + $0xc] sm:$0xf]
    %v530 = vld [vmem:[%s525 + $0x10] sm:$0xf]
    %v531 = vld [vmem:[%s525 + $0x14] sm:$0xf]
    %v532 = vld [vmem:[%s525 + $0x18] sm:$0xf]
    %v533 = vld [vmem:[%s525 + $0x1c] sm:$0xf]
    %v534 = vld [vmem:[%s525 + $0x20] sm:$0xf]
    %v535 = vld [vmem:[%s525 + $0x24] sm:$0xf]
    %v536 = vld [vmem:[%s525 + $0x28] sm:$0xf]
    %v537 = vld [vmem:[%s525 + $0x2c] sm:$0xf]
    %v538 = vld [vmem:[%s525 + $0x30] sm:$0xf]
    %v539 = vld [vmem:[%s525 + $0x34] sm:$0xf]
    %v540 = vld [vmem:[%s525 + $0x38] sm:$0xf]
    %v541 = vld [vmem:[%s525 + $0x3c] sm:$0xf]
    %s542 = scalar_lea.vmem %s5, 2
    %v543 = vld [vmem:[%s542] sm:$0x1]
    %v545 = vlaneseq
    %v546 = vshrl.u32 %v545, 7
    %v547 = vsub.s32 0, %v546
    %v548 = vrot.slane %v543, %v547
    %v566 = vunpack.c.l.b16 %v526
    %v567 = vunpack.c.l.b16 %v527
    %v568 = vunpack.c.l.b16 %v528
    %v569 = vunpack.c.l.b16 %v529
    %v570 = vunpack.c.l.b16 %v530
    %v571 = vunpack.c.l.b16 %v531
    %v572 = vunpack.c.l.b16 %v532
    %v573 = vunpack.c.l.b16 %v533
    %v574 = vunpack.c.l.b16 %v534
    %v575 = vunpack.c.l.b16 %v535
    %v576 = vunpack.c.l.b16 %v536
    %v577 = vunpack.c.l.b16 %v537
    %v578 = vunpack.c.l.b16 %v538
    %v579 = vunpack.c.l.b16 %v539
    %v580 = vunpack.c.l.b16 %v540
    %v581 = vunpack.c.l.b16 %v541
    %v582 = vpack.c.b16 %v567, %v566
    %v583 = vpack.c.b16 %v569, %v568
    %v584 = vpack.c.b16 %v571, %v570
    %v585 = vpack.c.b16 %v573, %v572
    %v586 = vpack.c.b16 %v575, %v574
    %v587 = vpack.c.b16 %v577, %v576
    %v588 = vpack.c.b16 %v579, %v578
    %v589 = vpack.c.b16 %v581, %v580
    %598 = vmatprep.subr.bf16.mxu0 0
    %599 = vmatpush1.bf16.msra.mxu0 %v582
    %600 = vmatprep.subr.bf16.mxu0 0
    %601 = vmatpush1.bf16.msra.mxu0 %v583
    %602 = vmatprep.subr.bf16.mxu0 0
    %603 = vmatpush1.bf16.msra.mxu0 %v584
    %604 = vmatprep.subr.bf16.mxu0 0
    %605 = vmatpush1.bf16.msra.mxu0 %v585
    %606 = vmatprep.subr.bf16.mxu0 0
    %607 = vmatpush1.bf16.msra.mxu0 %v586
    %608 = vmatprep.subr.bf16.mxu0 0
    %609 = vmatpush1.bf16.msra.mxu0 %v587
    %610 = vmatprep.subr.bf16.mxu0 0
    %611 = vmatpush1.bf16.msra.mxu0 %v588
    %612 = vmatprep.subr.bf16.mxu0 0
    %613 = vmatpush1.bf16.msra.mxu0 %v589
    %614 = vmatprep.subr.bf16.mxu0 0
    %615 = vmatpush1.bf16.msra.mxu0 0
    %616 = vmatprep.subr.bf16.mxu0 0
    %617 = vmatpush1.bf16.msra.mxu0 0
    %618 = vmatprep.subr.bf16.mxu0 0
    %619 = vmatpush1.bf16.msra.mxu0 0
    %620 = vmatprep.subr.bf16.mxu0 0
    %621 = vmatpush1.bf16.msra.mxu0 0
    %622 = vmatprep.subr.bf16.mxu0 0
    %623 = vmatpush1.bf16.msra.mxu0 0
    %624 = vmatprep.subr.bf16.mxu0 0
    %625 = vmatpush1.bf16.msra.mxu0 0
    %626 = vmatprep.subr.bf16.mxu0 0
    %627 = vmatpush1.bf16.msra.mxu0 0
    %628 = vmatprep.subr.bf16.mxu0 0
    %629 = vmatpush1.bf16.msra.mxu0 0
    %630 = vmatprep.mubr.bf16.mxu0 0
    %631 = vmatmul.mubr.bf16.gmra.mrb[0].mxu0 %v524
    %v632 = vpop.f32.mrb[0].mxu0
    %v633 = vadd.f32 %v548, %v632
    %v634 = vpop.f32.mrb[0].mxu0
    %v635 = vpop.f32.mrb[0].mxu0
    %v636 = vadd.f32 %v548, %v635
    %v637 = vpop.f32.mrb[0].mxu0
    %638 = vdwg.mxu0
    %v639 = vmax.f32 %v633, 0.0
    %v640 = vmax.f32 %v636, 0.0
    %v641 = vpack.c.bf16 %v640, %v639
    %s642 = scalar_lea.vmem [#allocation6], 128
    %v643 = vld [vmem:[%s642] sm:$0xf]
    %v644 = vld [vmem:[%s642 + $0x4] sm:$0xf]
    %v645 = vld [vmem:[%s642 + $0x8] sm:$0xf]
    %v646 = vld [vmem:[%s642 + $0xc] sm:$0xf]
    %v647 = vld [vmem:[%s642 + $0x10] sm:$0xf]
    %v648 = vld [vmem:[%s642 + $0x14] sm:$0xf]
    %v649 = vld [vmem:[%s642 + $0x18] sm:$0xf]
    %v650 = vld [vmem:[%s642 + $0x1c] sm:$0xf]
    %v651 = vld [vmem:[%s642 + $0x20] sm:$0xf]
    %v652 = vld [vmem:[%s642 + $0x24] sm:$0xf]
    %v653 = vld [vmem:[%s642 + $0x28] sm:$0xf]
    %v654 = vld [vmem:[%s642 + $0x2c] sm:$0xf]
    %v655 = vld [vmem:[%s642 + $0x30] sm:$0xf]
    %v656 = vld [vmem:[%s642 + $0x34] sm:$0xf]
    %v657 = vld [vmem:[%s642 + $0x38] sm:$0xf]
    %v658 = vld [vmem:[%s642 + $0x3c] sm:$0xf]
    %s659 = scalar_lea.vmem %s5, 3
    %v660 = vld [vmem:[%s659] sm:$0x1]
    %v662 = vlaneseq
    %v663 = vshrl.u32 %v662, 7
    %v664 = vsub.s32 0, %v663
    %v665 = vrot.slane %v660, %v664
    %v683 = vunpack.c.l.b16 %v643
    %v684 = vunpack.c.l.b16 %v644
    %v685 = vunpack.c.l.b16 %v645
    %v686 = vunpack.c.l.b16 %v646
    %v687 = vunpack.c.l.b16 %v647
    %v688 = vunpack.c.l.b16 %v648
    %v689 = vunpack.c.l.b16 %v649
    %v690 = vunpack.c.l.b16 %v650
    %v691 = vunpack.c.l.b16 %v651
    %v692 = vunpack.c.l.b16 %v652
    %v693 = vunpack.c.l.b16 %v653
    %v694 = vunpack.c.l.b16 %v654
    %v695 = vunpack.c.l.b16 %v655
    %v696 = vunpack.c.l.b16 %v656
    %v697 = vunpack.c.l.b16 %v657
    %v698 = vunpack.c.l.b16 %v658
    %v699 = vpack.c.b16 %v684, %v683
    %v700 = vpack.c.b16 %v686, %v685
    %v701 = vpack.c.b16 %v688, %v687
    %v702 = vpack.c.b16 %v690, %v689
    %v703 = vpack.c.b16 %v692, %v691
    %v704 = vpack.c.b16 %v694, %v693
    %v705 = vpack.c.b16 %v696, %v695
    %v706 = vpack.c.b16 %v698, %v697
    %715 = vmatprep.subr.bf16.mxu0 0
    %716 = vmatpush1.bf16.msra.mxu0 %v699
    %717 = vmatprep.subr.bf16.mxu0 0
    %718 = vmatpush1.bf16.msra.mxu0 %v700
    %719 = vmatprep.subr.bf16.mxu0 0
    %720 = vmatpush1.bf16.msra.mxu0 %v701
    %721 = vmatprep.subr.bf16.mxu0 0
    %722 = vmatpush1.bf16.msra.mxu0 %v702
    %723 = vmatprep.subr.bf16.mxu0 0
    %724 = vmatpush1.bf16.msra.mxu0 %v703
    %725 = vmatprep.subr.bf16.mxu0 0
    %726 = vmatpush1.bf16.msra.mxu0 %v704
    %727 = vmatprep.subr.bf16.mxu0 0
    %728 = vmatpush1.bf16.msra.mxu0 %v705
    %729 = vmatprep.subr.bf16.mxu0 0
    %730 = vmatpush1.bf16.msra.mxu0 %v706
    %731 = vmatprep.subr.bf16.mxu0 0
    %732 = vmatpush1.bf16.msra.mxu0 0
    %733 = vmatprep.subr.bf16.mxu0 0
    %734 = vmatpush1.bf16.msra.mxu0 0
    %735 = vmatprep.subr.bf16.mxu0 0
    %736 = vmatpush1.bf16.msra.mxu0 0
    %737 = vmatprep.subr.bf16.mxu0 0
    %738 = vmatpush1.bf16.msra.mxu0 0
    %739 = vmatprep.subr.bf16.mxu0 0
    %740 = vmatpush1.bf16.msra.mxu0 0
    %741 = vmatprep.subr.bf16.mxu0 0
    %742 = vmatpush1.bf16.msra.mxu0 0
    %743 = vmatprep.subr.bf16.mxu0 0
    %744 = vmatpush1.bf16.msra.mxu0 0
    %745 = vmatprep.subr.bf16.mxu0 0
    %746 = vmatpush1.bf16.msra.mxu0 0
    %747 = vmatprep.mubr.bf16.mxu0 0
    %748 = vmatmul.mubr.bf16.gmra.mrb[0].mxu0 %v641
    %v749 = vpop.f32.mrb[0].mxu0
    %v750 = vadd.f32 %v665, %v749
    %v751 = vpop.f32.mrb[0].mxu0
    %v752 = vpop.f32.mrb[0].mxu0
    %v753 = vadd.f32 %v665, %v752
    %v754 = vpop.f32.mrb[0].mxu0
    %755 = vdwg.mxu0
    %v756 = vmax.f32 %v750, 0.0
    %v757 = vmax.f32 %v753, 0.0
    %v758 = vpack.c.bf16 %v757, %v756
    %s759 = scalar_lea.vmem [#allocation6], 192
    %v760 = vld [vmem:[%s759] sm:$0xf]
    %v761 = vld [vmem:[%s759 + $0x4] sm:$0xf]
    %v762 = vld [vmem:[%s759 + $0x8] sm:$0xf]
    %v763 = vld [vmem:[%s759 + $0xc] sm:$0xf]
    %v764 = vld [vmem:[%s759 + $0x10] sm:$0xf]
    %v765 = vld [vmem:[%s759 + $0x14] sm:$0xf]
    %v766 = vld [vmem:[%s759 + $0x18] sm:$0xf]
    %v767 = vld [vmem:[%s759 + $0x1c] sm:$0xf]
    %v768 = vld [vmem:[%s759 + $0x20] sm:$0xf]
    %v769 = vld [vmem:[%s759 + $0x24] sm:$0xf]
    %v770 = vld [vmem:[%s759 + $0x28] sm:$0xf]
    %v771 = vld [vmem:[%s759 + $0x2c] sm:$0xf]
    %v772 = vld [vmem:[%s759 + $0x30] sm:$0xf]
    %v773 = vld [vmem:[%s759 + $0x34] sm:$0xf]
    %v774 = vld [vmem:[%s759 + $0x38] sm:$0xf]
    %v775 = vld [vmem:[%s759 + $0x3c] sm:$0xf]
    %s776 = scalar_lea.vmem %s5, 4
    %v777 = vld [vmem:[%s776] sm:$0x1]
    %v779 = vlaneseq
    %v780 = vshrl.u32 %v779, 7
    %v781 = vsub.s32 0, %v780
    %v782 = vrot.slane %v777, %v781
    %v800 = vunpack.c.l.b16 %v760
    %v801 = vunpack.c.l.b16 %v761
    %v802 = vunpack.c.l.b16 %v762
    %v803 = vunpack.c.l.b16 %v763
    %v804 = vunpack.c.l.b16 %v764
    %v805 = vunpack.c.l.b16 %v765
    %v806 = vunpack.c.l.b16 %v766
    %v807 = vunpack.c.l.b16 %v767
    %v808 = vunpack.c.l.b16 %v768
    %v809 = vunpack.c.l.b16 %v769
    %v810 = vunpack.c.l.b16 %v770
    %v811 = vunpack.c.l.b16 %v771
    %v812 = vunpack.c.l.b16 %v772
    %v813 = vunpack.c.l.b16 %v773
    %v814 = vunpack.c.l.b16 %v774
    %v815 = vunpack.c.l.b16 %v775
    %v816 = vpack.c.b16 %v801, %v800
    %v817 = vpack.c.b16 %v803, %v802
    %v818 = vpack.c.b16 %v805, %v804
    %v819 = vpack.c.b16 %v807, %v806
    %v820 = vpack.c.b16 %v809, %v808
    %v821 = vpack.c.b16 %v811, %v810
    %v822 = vpack.c.b16 %v813, %v812
    %v823 = vpack.c.b16 %v815, %v814
    %832 = vmatprep.subr.bf16.mxu0 0
    %833 = vmatpush1.bf16.msra.mxu0 %v816
    %834 = vmatprep.subr.bf16.mxu0 0
    %835 = vmatpush1.bf16.msra.mxu0 %v817
    %836 = vmatprep.subr.bf16.mxu0 0
    %837 = vmatpush1.bf16.msra.mxu0 %v818
    %838 = vmatprep.subr.bf16.mxu0 0
    %839 = vmatpush1.bf16.msra.mxu0 %v819
    %840 = vmatprep.subr.bf16.mxu0 0
    %841 = vmatpush1.bf16.msra.mxu0 %v820
    %842 = vmatprep.subr.bf16.mxu0 0
    %843 = vmatpush1.bf16.msra.mxu0 %v821
    %844 = vmatprep.subr.bf16.mxu0 0
    %845 = vmatpush1.bf16.msra.mxu0 %v822
    %846 = vmatprep.subr.bf16.mxu0 0
    %847 = vmatpush1.bf16.msra.mxu0 %v823
    %848 = vmatprep.subr.bf16.mxu0 0
    %849 = vmatpush1.bf16.msra.mxu0 0
    %850 = vmatprep.subr.bf16.mxu0 0
    %851 = vmatpush1.bf16.msra.mxu0 0
    %852 = vmatprep.subr.bf16.mxu0 0
    %853 = vmatpush1.bf16.msra.mxu0 0
    %854 = vmatprep.subr.bf16.mxu0 0
    %855 = vmatpush1.bf16.msra.mxu0 0
    %856 = vmatprep.subr.bf16.mxu0 0
    %857 = vmatpush1.bf16.msra.mxu0 0
    %858 = vmatprep.subr.bf16.mxu0 0
    %859 = vmatpush1.bf16.msra.mxu0 0
    %860 = vmatprep.subr.bf16.mxu0 0
    %861 = vmatpush1.bf16.msra.mxu0 0
    %862 = vmatprep.subr.bf16.mxu0 0
    %863 = vmatpush1.bf16.msra.mxu0 0
    %864 = vmatprep.mubr.bf16.mxu0 0
    %865 = vmatmul.mubr.bf16.gmra.mrb[0].mxu0 %v758
    %v866 = vpop.f32.mrb[0].mxu0
    %v867 = vadd.f32 %v782, %v866
    %v868 = vpop.f32.mrb[0].mxu0
    %v869 = vpop.f32.mrb[0].mxu0
    %v870 = vadd.f32 %v782, %v869
    %v871 = vpop.f32.mrb[0].mxu0
    %872 = vdwg.mxu0
    %v873 = vmax.f32 %v867, 0.0
    %v874 = vmax.f32 %v870, 0.0
    %v875 = vpack.c.bf16 %v874, %v873
    %s876 = scalar_lea.vmem [#allocation6], 256
    %v877 = vld [vmem:[%s876] sm:$0xf]
    %v878 = vld [vmem:[%s876 + $0x4] sm:$0xf]
    %v879 = vld [vmem:[%s876 + $0x8] sm:$0xf]
    %v880 = vld [vmem:[%s876 + $0xc] sm:$0xf]
    %v881 = vld [vmem:[%s876 + $0x10] sm:$0xf]
    %v882 = vld [vmem:[%s876 + $0x14] sm:$0xf]
    %v883 = vld [vmem:[%s876 + $0x18] sm:$0xf]
    %v884 = vld [vmem:[%s876 + $0x1c] sm:$0xf]
    %v885 = vld [vmem:[%s876 + $0x20] sm:$0xf]
    %v886 = vld [vmem:[%s876 + $0x24] sm:$0xf]
    %v887 = vld [vmem:[%s876 + $0x28] sm:$0xf]
    %v888 = vld [vmem:[%s876 + $0x2c] sm:$0xf]
    %v889 = vld [vmem:[%s876 + $0x30] sm:$0xf]
    %v890 = vld [vmem:[%s876 + $0x34] sm:$0xf]
    %v891 = vld [vmem:[%s876 + $0x38] sm:$0xf]
    %v892 = vld [vmem:[%s876 + $0x3c] sm:$0xf]
    %s893 = scalar_lea.vmem %s5, 5
    %v894 = vld [vmem:[%s893] sm:$0x1]
    %v896 = vlaneseq
    %v897 = vshrl.u32 %v896, 7
    %v898 = vsub.s32 0, %v897
    %v899 = vrot.slane %v894, %v898
    %v917 = vunpack.c.l.b16 %v877
    %v918 = vunpack.c.l.b16 %v878
    %v919 = vunpack.c.l.b16 %v879
    %v920 = vunpack.c.l.b16 %v880
    %v921 = vunpack.c.l.b16 %v881
    %v922 = vunpack.c.l.b16 %v882
    %v923 = vunpack.c.l.b16 %v883
    %v924 = vunpack.c.l.b16 %v884
    %v925 = vunpack.c.l.b16 %v885
    %v926 = vunpack.c.l.b16 %v886
    %v927 = vunpack.c.l.b16 %v887
    %v928 = vunpack.c.l.b16 %v888
    %v929 = vunpack.c.l.b16 %v889
    %v930 = vunpack.c.l.b16 %v890
    %v931 = vunpack.c.l.b16 %v891
    %v932 = vunpack.c.l.b16 %v892
    %v933 = vpack.c.b16 %v918, %v917
    %v934 = vpack.c.b16 %v920, %v919
    %v935 = vpack.c.b16 %v922, %v921
    %v936 = vpack.c.b16 %v924, %v923
    %v937 = vpack.c.b16 %v926, %v925
    %v938 = vpack.c.b16 %v928, %v927
    %v939 = vpack.c.b16 %v930, %v929
    %v940 = vpack.c.b16 %v932, %v931
    %949 = vmatprep.subr.bf16.mxu0 0
    %950 = vmatpush1.bf16.msra.mxu0 %v933
    %951 = vmatprep.subr.bf16.mxu0 0
    %952 = vmatpush1.bf16.msra.mxu0 %v934
    %953 = vmatprep.subr.bf16.mxu0 0
    %954 = vmatpush1.bf16.msra.mxu0 %v935
    %955 = vmatprep.subr.bf16.mxu0 0
    %956 = vmatpush1.bf16.msra.mxu0 %v936
    %957 = vmatprep.subr.bf16.mxu0 0
    %958 = vmatpush1.bf16.msra.mxu0 %v937
    %959 = vmatprep.subr.bf16.mxu0 0
    %960 = vmatpush1.bf16.msra.mxu0 %v938
    %961 = vmatprep.subr.bf16.mxu0 0
    %962 = vmatpush1.bf16.msra.mxu0 %v939
    %963 = vmatprep.subr.bf16.mxu0 0
    %964 = vmatpush1.bf16.msra.mxu0 %v940
    %965 = vmatprep.subr.bf16.mxu0 0
    %966 = vmatpush1.bf16.msra.mxu0 0
    %967 = vmatprep.subr.bf16.mxu0 0
    %968 = vmatpush1.bf16.msra.mxu0 0
    %969 = vmatprep.subr.bf16.mxu0 0
    %970 = vmatpush1.bf16.msra.mxu0 0
    %971 = vmatprep.subr.bf16.mxu0 0
    %972 = vmatpush1.bf16.msra.mxu0 0
    %973 = vmatprep.subr.bf16.mxu0 0
    %974 = vmatpush1.bf16.msra.mxu0 0
    %975 = vmatprep.subr.bf16.mxu0 0
    %976 = vmatpush1.bf16.msra.mxu0 0
    %977 = vmatprep.subr.bf16.mxu0 0
    %978 = vmatpush1.bf16.msra.mxu0 0
    %979 = vmatprep.subr.bf16.mxu0 0
    %980 = vmatpush1.bf16.msra.mxu0 0
    %981 = vmatprep.mubr.bf16.mxu0 0
    %982 = vmatmul.mubr.bf16.gmra.mrb[0].mxu0 %v875
    %v983 = vpop.f32.mrb[0].mxu0
    %v984 = vadd.f32 %v899, %v983
    %v985 = vpop.f32.mrb[0].mxu0
    %v986 = vpop.f32.mrb[0].mxu0
    %v987 = vadd.f32 %v899, %v986
    %v988 = vpop.f32.mrb[0].mxu0
    %989 = vdwg.mxu0
    %v990 = vmax.f32 %v984, 0.0
    %v991 = vmax.f32 %v987, 0.0
    %v992 = vpack.c.bf16 %v991, %v990
    %s993 = scalar_lea.vmem [#allocation6], 320
    %v994 = vld [vmem:[%s993] sm:$0xf]
    %v995 = vld [vmem:[%s993 + $0x4] sm:$0xf]
    %v996 = vld [vmem:[%s993 + $0x8] sm:$0xf]
    %v997 = vld [vmem:[%s993 + $0xc] sm:$0xf]
    %v998 = vld [vmem:[%s993 + $0x10] sm:$0xf]
    %v999 = vld [vmem:[%s993 + $0x14] sm:$0xf]
    %v1000 = vld [vmem:[%s993 + $0x18] sm:$0xf]
    %v1001 = vld [vmem:[%s993 + $0x1c] sm:$0xf]
    %v1002 = vld [vmem:[%s993 + $0x20] sm:$0xf]
    %v1003 = vld [vmem:[%s993 + $0x24] sm:$0xf]
    %v1004 = vld [vmem:[%s993 + $0x28] sm:$0xf]
    %v1005 = vld [vmem:[%s993 + $0x2c] sm:$0xf]
    %v1006 = vld [vmem:[%s993 + $0x30] sm:$0xf]
    %v1007 = vld [vmem:[%s993 + $0x34] sm:$0xf]
    %v1008 = vld [vmem:[%s993 + $0x38] sm:$0xf]
    %v1009 = vld [vmem:[%s993 + $0x3c] sm:$0xf]
    %s1010 = scalar_lea.vmem %s5, 6
    %v1011 = vld [vmem:[%s1010] sm:$0x1]
    %v1013 = vlaneseq
    %v1014 = vshrl.u32 %v1013, 7
    %v1015 = vsub.s32 0, %v1014
    %v1016 = vrot.slane %v1011, %v1015
    %v1034 = vunpack.c.l.b16 %v994
    %v1035 = vunpack.c.l.b16 %v995
    %v1036 = vunpack.c.l.b16 %v996
    %v1037 = vunpack.c.l.b16 %v997
    %v1038 = vunpack.c.l.b16 %v998
    %v1039 = vunpack.c.l.b16 %v999
    %v1040 = vunpack.c.l.b16 %v1000
    %v1041 = vunpack.c.l.b16 %v1001
    %v1042 = vunpack.c.l.b16 %v1002
    %v1043 = vunpack.c.l.b16 %v1003
    %v1044 = vunpack.c.l.b16 %v1004
    %v1045 = vunpack.c.l.b16 %v1005
    %v1046 = vunpack.c.l.b16 %v1006
    %v1047 = vunpack.c.l.b16 %v1007
    %v1048 = vunpack.c.l.b16 %v1008
    %v1049 = vunpack.c.l.b16 %v1009
    %v1050 = vpack.c.b16 %v1035, %v1034
    %v1051 = vpack.c.b16 %v1037, %v1036
    %v1052 = vpack.c.b16 %v1039, %v1038
    %v1053 = vpack.c.b16 %v1041, %v1040
    %v1054 = vpack.c.b16 %v1043, %v1042
    %v1055 = vpack.c.b16 %v1045, %v1044
    %v1056 = vpack.c.b16 %v1047, %v1046
    %v1057 = vpack.c.b16 %v1049, %v1048
    %1066 = vmatprep.subr.bf16.mxu0 0
    %1067 = vmatpush1.bf16.msra.mxu0 %v1050
    %1068 = vmatprep.subr.bf16.mxu0 0
    %1069 = vmatpush1.bf16.msra.mxu0 %v1051
    %1070 = vmatprep.subr.bf16.mxu0 0
    %1071 = vmatpush1.bf16.msra.mxu0 %v1052
    %1072 = vmatprep.subr.bf16.mxu0 0
    %1073 = vmatpush1.bf16.msra.mxu0 %v1053
    %1074 = vmatprep.subr.bf16.mxu0 0
    %1075 = vmatpush1.bf16.msra.mxu0 %v1054
    %1076 = vmatprep.subr.bf16.mxu0 0
    %1077 = vmatpush1.bf16.msra.mxu0 %v1055
    %1078 = vmatprep.subr.bf16.mxu0 0
    %1079 = vmatpush1.bf16.msra.mxu0 %v1056
    %1080 = vmatprep.subr.bf16.mxu0 0
    %1081 = vmatpush1.bf16.msra.mxu0 %v1057
    %1082 = vmatprep.subr.bf16.mxu0 0
    %1083 = vmatpush1.bf16.msra.mxu0 0
    %1084 = vmatprep.subr.bf16.mxu0 0
    %1085 = vmatpush1.bf16.msra.mxu0 0
    %1086 = vmatprep.subr.bf16.mxu0 0
    %1087 = vmatpush1.bf16.msra.mxu0 0
    %1088 = vmatprep.subr.bf16.mxu0 0
    %1089 = vmatpush1.bf16.msra.mxu0 0
    %1090 = vmatprep.subr.bf16.mxu0 0
    %1091 = vmatpush1.bf16.msra.mxu0 0
    %1092 = vmatprep.subr.bf16.mxu0 0
    %1093 = vmatpush1.bf16.msra.mxu0 0
    %1094 = vmatprep.subr.bf16.mxu0 0
    %1095 = vmatpush1.bf16.msra.mxu0 0
    %1096 = vmatprep.subr.bf16.mxu0 0
    %1097 = vmatpush1.bf16.msra.mxu0 0
    %1098 = vmatprep.mubr.bf16.mxu0 0
    %1099 = vmatmul.mubr.bf16.gmra.mrb[0].mxu0 %v992
    %v1100 = vpop.f32.mrb[0].mxu0
    %v1101 = vadd.f32 %v1016, %v1100
    %v1102 = vpop.f32.mrb[0].mxu0
    %v1103 = vpop.f32.mrb[0].mxu0
    %v1104 = vadd.f32 %v1016, %v1103
    %v1105 = vpop.f32.mrb[0].mxu0
    %1106 = vdwg.mxu0
    %1107 = vst [vmem:[%s6] sm:$0xff] %v1101
    %1108 = vst [vmem:[%s6 + $0x8] sm:$0xff] %v1104
    // Predicated region
    $region38: #{actor_critic_forward.1} parent=1 // pred_check
      _
    $region39: #{actor_critic_forward.1} parent=1 // pred_check_branch
      %1110 = sbr.rel (0) target = $region41
    $region40: #{actor_critic_forward.1} parent=1 // pred_region
      _
    $region41: #{actor_critic_forward.1} parent=1 // pred_fallthru
      _
    // Predicated region
    $region42: #{actor_critic_forward.1} parent=1 // pred_check
      _
    $region43: #{actor_critic_forward.1} parent=1 // pred_check_branch
      %1112 = sbr.rel (0) target = $region45
    $region44: #{actor_critic_forward.1} parent=1 // pred_region
      _
    $region45: #{actor_critic_forward.1} parent=1 // pred_fallthru
      _
    %1113 = vsyncpa [#allocation3], 1
    %1114 = vsyncpa [#allocation5], 1

</llo_original>
